<compile_context>
chip_gen: v6e
topology: v6e:2x2x1
jax: 0.10.0
libtpu: 0.0.40
codegen_flags: <defaults>
</compile_context>

<pallas_src>
import functools

import jax
import jax.numpy as jnp
from jax.experimental import pallas as pl
from jax.experimental.pallas import tpu as pltpu

LANE = 128          # lane width / feature padding target
ROW_TILE = 512      # tiled-path row/alignment granularity


def _round_up(x, m):
    return ((x + m - 1) // m) * m


@functools.lru_cache(maxsize=1)
def _physical_vmem_bytes():
    """Per-core physical VMEM (v5e/v6e: 128 MiB, v7x: 64 MiB)."""
    try:
        return int(pltpu.get_tpu_info().vmem_capacity_bytes)
    except Exception:
        return 128 * 1024 * 1024


# ----------------------------------------------------------------------------
# VMEM budgeting helpers (Python ints only; everything here is trace-time)
# ----------------------------------------------------------------------------
def _fused_vmem_bytes(npad, f_pad, n_layers):
    a = npad * npad * 2                    # A: single-buffered VMEM scratch
    x = npad * f_pad * 2 * 2               # x input (default double buffer)
    w = n_layers * f_pad * f_pad * 2 * 2   # W stack
    b = n_layers * f_pad * 4 * 2
    out = npad * f_pad * 4 * 2             # f32 output (double buffer)
    h = npad * f_pad * 2                   # H scratch (bf16)
    tmp = 2 * npad * f_pad * 4             # f32 intermediates (A@H, (..)@W)
    return a + x + w + b + out + h + tmp


def _fused_node_cap(phys_vmem, f_pad, n_layers):
    """Largest npad (multiple of 512, capped at 4096) whose fused working set
    fits ~50% of physical VMEM. Automatically lower on v7x (64 MiB)."""
    cap = ROW_TILE
    npad = ROW_TILE
    while npad <= 4096:
        if _fused_vmem_bytes(npad, f_pad, n_layers) <= int(phys_vmem * 0.5):
            cap = npad
        npad += ROW_TILE
    return cap


def _rows_vmem_bytes(tile_m, npad, f_pad):
    a = tile_m * npad * 2 * 2              # A row slab, double-buffered
    h = npad * f_pad * 2 * 2               # resident H
    w = f_pad * f_pad * 2 * 2
    b = f_pad * 4 * 2
    out = tile_m * f_pad * 4 * 2
    tmp = 2 * tile_m * f_pad * 4
    return a + h + w + b + out + tmp


def _ksplit_vmem_bytes(tile_m, tile_k, f_pad):
    a = tile_m * tile_k * 2 * 2
    h = tile_k * f_pad * 2 * 2
    w = f_pad * f_pad * 2 * 2
    b = f_pad * 4 * 2
    out = tile_m * f_pad * 4 * 2
    acc = tile_m * f_pad * 4
    tmp = 2 * tile_m * f_pad * 4
    return a + h + w + b + out + acc + tmp


def _vmem_limit(phys_vmem, estimate_bytes):
    """Scoped VMEM limit: our estimate + generous headroom, <= 85% physical."""
    return int(min(phys_vmem * 0.85, max(32 << 20, estimate_bytes + (24 << 20))))


def _choose_tile_k(npad):
    for cand in (2048, 1024, 512):
        if cand <= npad and npad % cand == 0:
            return cand
    return npad


# ----------------------------------------------------------------------------
# Kernel 1: fused multi-layer forward (A single-buffered in VMEM, all layers)
# ----------------------------------------------------------------------------
def _gcn_fused_kernel(a_hbm, x_ref, w_ref, b_ref, out_ref, a_vmem, h_ref):
    num_total = w_ref.shape[0]              # static

    # Single-buffered A: one DMA HBM -> VMEM, reused by every layer.
    pltpu.sync_copy(a_hbm, a_vmem)
    h_ref[...] = x_ref[...]

    def body(l, carry):
        ah = jnp.dot(a_vmem[...], h_ref[...], preferred_element_type=jnp.float32)
        z = jnp.dot(ah.astype(jnp.bfloat16), w_ref[l],
                    preferred_element_type=jnp.float32)
        h_ref[...] = jnp.maximum(z + b_ref[l], 0.0).astype(jnp.bfloat16)
        return carry

    # Hidden layers via fori_loop (no static-unroll schedule/VMEM bloat).
    jax.lax.fori_loop(0, num_total - 1, body, 0)

    # Final layer kept in f32 (matches tiled path and reference).
    ah = jnp.dot(a_vmem[...], h_ref[...], preferred_element_type=jnp.float32)
    z = jnp.dot(ah.astype(jnp.bfloat16), w_ref[num_total - 1],
                preferred_element_type=jnp.float32)
    out_ref[...] = jnp.maximum(z + b_ref[num_total - 1], 0.0)


def gcn_forward_fused(a_bf, x_bf, w_stack, b_stack, *, phys_vmem):
    npad, f_pad = x_bf.shape
    num_layers_total = w_stack.shape[0]
    flops = num_layers_total * (2 * npad * npad * f_pad + 2 * npad * f_pad * f_pad)
    bytes_accessed = (a_bf.size + x_bf.size + w_stack.size) * 2 \
        + b_stack.size * 4 + npad * f_pad * 4
    vmem_limit = _vmem_limit(phys_vmem,
                             _fused_vmem_bytes(npad, f_pad, num_layers_total))
    return pl.pallas_call(
        _gcn_fused_kernel,
        out_shape=jax.ShapeDtypeStruct((npad, f_pad), jnp.float32),
        grid=(1,),
        in_specs=[
            # A stays in HBM; one explicit DMA inside the kernel -> single buffer.
            pl.BlockSpec(memory_space=pl.ANY),
            pl.BlockSpec((npad, f_pad), lambda i: (0, 0)),
            pl.BlockSpec((num_layers_total, f_pad, f_pad), lambda i: (0, 0, 0)),
            pl.BlockSpec((num_layers_total, 1, f_pad), lambda i: (0, 0, 0)),
        ],
        out_specs=pl.BlockSpec((npad, f_pad), lambda i: (0, 0)),
        scratch_shapes=[pltpu.VMEM((npad, npad), jnp.bfloat16),
                        pltpu.VMEM((npad, f_pad), jnp.bfloat16)],
        compiler_params=pltpu.CompilerParams(
            dimension_semantics=("arbitrary",),
            vmem_limit_bytes=vmem_limit),
        cost_estimate=pl.CostEstimate(flops=flops, transcendentals=0,
                                      bytes_accessed=bytes_accessed),
    )(a_bf, x_bf, w_stack, b_stack)


# ----------------------------------------------------------------------------
# Kernel 2a: one GCN layer, row-tiled with full-K A slab (no reduction axis,
#            no accumulator scratch); row axis "parallel" for megacore.
# ----------------------------------------------------------------------------
def _gcn_layer_rows_kernel(a_ref, h_ref, w_ref, b_ref, out_ref):
    ah = jnp.dot(a_ref[...], h_ref[...], preferred_element_type=jnp.float32)
    z = jnp.dot(ah.astype(jnp.bfloat16), w_ref[...],
                preferred_element_type=jnp.float32)
    out_ref[...] = jnp.maximum(z + b_ref[...], 0.0).astype(out_ref.dtype)


def gcn_layer_rows(a_bf, h_bf, w_bf, b2d, *, tile_m, out_dtype, phys_vmem):
    npad = a_bf.shape[0]
    f_pad = w_bf.shape[1]
    grid = (npad // tile_m,)
    flops = 2 * npad * npad * f_pad + 2 * npad * f_pad * f_pad
    out_bytes = npad * f_pad * jnp.dtype(out_dtype).itemsize
    bytes_accessed = (a_bf.size + h_bf.size + w_bf.size) * 2 \
        + b2d.size * 4 + out_bytes
    vmem_limit = _vmem_limit(phys_vmem, _rows_vmem_bytes(tile_m, npad, f_pad))
    return pl.pallas_call(
        _gcn_layer_rows_kernel,
        out_shape=jax.ShapeDtypeStruct((npad, f_pad), out_dtype),
        grid=grid,
        in_specs=[
            pl.BlockSpec((tile_m, npad), lambda i: (i, 0)),
            pl.BlockSpec((npad, f_pad), lambda i: (0, 0)),
            pl.BlockSpec((f_pad, f_pad), lambda i: (0, 0)),
            pl.BlockSpec((1, f_pad), lambda i: (0, 0)),
        ],
        out_specs=pl.BlockSpec((tile_m, f_pad), lambda i: (i, 0)),
        compiler_params=pltpu.CompilerParams(
            dimension_semantics=("parallel",),
            vmem_limit_bytes=vmem_limit),
        cost_estimate=pl.CostEstimate(flops=flops, transcendentals=0,
                                      bytes_accessed=bytes_accessed),
    )(a_bf, h_bf, w_bf, b2d)


# ----------------------------------------------------------------------------
# Kernel 2b: one GCN layer, (row tiles x reduction tiles) for huge graphs.
# ----------------------------------------------------------------------------
def _gcn_layer_ksplit_kernel(a_ref, h_ref, w_ref, b_ref, out_ref, acc_ref):
    k = pl.program_id(1)

    @pl.when(k == 0)
    def _():
        acc_ref[...] = jnp.zeros_like(acc_ref)

    acc_ref[...] += jnp.dot(a_ref[...], h_ref[...],
                            preferred_element_type=jnp.float32)

    @pl.when(k == pl.num_programs(1) - 1)
    def _():
        z = jnp.dot(acc_ref[...].astype(jnp.bfloat16), w_ref[...],
                    preferred_element_type=jnp.float32)
        out_ref[...] = jnp.maximum(z + b_ref[...], 0.0).astype(out_ref.dtype)


def gcn_layer_ksplit(a_bf, h_bf, w_bf, b2d, *, tile_m, tile_k, out_dtype,
                     phys_vmem):
    npad = a_bf.shape[0]
    f_pad = w_bf.shape[1]
    grid = (npad // tile_m, npad // tile_k)
    flops = 2 * npad * npad * f_pad + 2 * npad * f_pad * f_pad
    out_bytes = npad * f_pad * jnp.dtype(out_dtype).itemsize
    bytes_accessed = (a_bf.size + h_bf.size + w_bf.size) * 2 \
        + b2d.size * 4 + out_bytes
    vmem_limit = _vmem_limit(phys_vmem, _ksplit_vmem_bytes(tile_m, tile_k, f_pad))
    return pl.pallas_call(
        _gcn_layer_ksplit_kernel,
        out_shape=jax.ShapeDtypeStruct((npad, f_pad), out_dtype),
        grid=grid,
        in_specs=[
            pl.BlockSpec((tile_m, tile_k), lambda i, k: (i, k)),
            pl.BlockSpec((tile_k, f_pad), lambda i, k: (k, 0)),
            pl.BlockSpec((f_pad, f_pad), lambda i, k: (0, 0)),
            pl.BlockSpec((1, f_pad), lambda i, k: (0, 0)),
        ],
        out_specs=pl.BlockSpec((tile_m, f_pad), lambda i, k: (i, 0)),
        scratch_shapes=[pltpu.VMEM((tile_m, f_pad), jnp.float32)],
        compiler_params=pltpu.CompilerParams(
            dimension_semantics=("parallel", "arbitrary"),
            vmem_limit_bytes=vmem_limit),
        cost_estimate=pl.CostEstimate(flops=flops, transcendentals=0,
                                      bytes_accessed=bytes_accessed),
    )(a_bf, h_bf, w_bf, b2d)


# ----------------------------------------------------------------------------
# Glue: padded bf16 normalized adjacency built in one pass (no [N,N] f32 +
# separate pad + separate cast round-trips).
# ----------------------------------------------------------------------------
def build_normalized_adjacency_padded(edge_index, num_nodes, npad,
                                      out_dtype=jnp.bfloat16):
    """D^{-1/2} (A + remaining self loops) D^{-1/2}, zero-padded to [npad, npad].

    Note: assumes unweighted (weight-1) edges, as in dense_to_sparse(ones);
    diverges from PyG gcn_norm if edge weights are ever introduced.
    """
    src, dst = edge_index[0], edge_index[1]
    adj = jnp.zeros((npad, npad), jnp.bfloat16)
    adj = adj.at[dst, src].set(1.0)                  # message flows src -> dst
    diag = jnp.arange(num_nodes)
    adj = adj.at[diag, diag].set(1.0)                # add_remaining_self_loops
    deg = jnp.sum(adj, axis=1, dtype=jnp.float32)    # padded rows -> deg 0
    dinv = jnp.where(deg > 0, jax.lax.rsqrt(deg), 0.0)
    a = dinv[:, None] * adj.astype(jnp.float32) * dinv[None, :]
    return a.astype(out_dtype)


# ----------------------------------------------------------------------------
# Parameters + forward
# ----------------------------------------------------------------------------
def init_params(key, input_dim, hidden_dim, num_layers):
    """Deterministic Glorot-uniform weights, zero biases (GCNConv default)."""
    dims = [(input_dim, hidden_dim)]
    for _ in range(num_layers - 1):
        dims.append((hidden_dim, hidden_dim))
    for _ in range(num_layers - 1):
        dims.append((hidden_dim, hidden_dim))
    dims.append((hidden_dim, input_dim))

    params = []
    for i, (fi, fo) in enumerate(dims):
        k = jax.random.fold_in(key, i)
        limit = jnp.sqrt(6.0 / (fi + fo))
        w = jax.random.uniform(k, (fi, fo), jnp.float32, -limit, limit)
        b = jnp.zeros((fo,), jnp.float32)
        params.append((w, b))
    return params


@functools.partial(jax.jit, static_argnames=("fused_max_nodes", "tiled_kernel"))
def graph_autoencoder_forward(x, edge_index, params, *, fused_max_nodes=None,
                              tiled_kernel="auto"):
    n, f_in = x.shape
    f_out_final = params[-1][0].shape[1]
    num_total = len(params)
    feat_dims = [f_in] + [d for (w, _) in params for d in w.shape]
    f_pad = _round_up(max(feat_dims), LANE)

    phys_vmem = _physical_vmem_bytes()
    auto_cap = _fused_node_cap(phys_vmem, f_pad, num_total)
    cap = auto_cap if fused_max_nodes is None else fused_max_nodes

    npad128 = _round_up(n, LANE)
    use_fused = npad128 <= cap
    # Tiled path is padded up to a multiple of 512 so tile_m=512 always applies
    # (zero rows/cols are free correctness-wise).
    npad = npad128 if use_fused else _round_up(n, ROW_TILE)

    # Padded bf16 normalized adjacency, built directly (no extra f32 copies).
    a_pad = build_normalized_adjacency_padded(edge_index, n, npad)

    # Node features, zero-padded to lane-dense width, bf16.
    h = jnp.zeros((npad, f_pad), jnp.bfloat16).at[:n, :f_in].set(
        x.astype(jnp.bfloat16))

    # Weights / biases zero-padded to [F_pad, F_pad] / [F_pad].
    w_pads, b_pads = [], []
    for (w, b) in params:
        fi, fo = w.shape
        wp = jnp.zeros((f_pad, f_pad), jnp.bfloat16).at[:fi, :fo].set(
            w.astype(jnp.bfloat16))
        bp = jnp.zeros((f_pad,), jnp.float32).at[:fo].set(b)
        w_pads.append(wp)
        b_pads.append(bp)

    if use_fused:
        # Fused path: A DMA'd to VMEM once (single-buffered) and reused by
        # every layer; removes (2L-1) full A reads vs. per-layer kernels.
        w_stack = jnp.stack(w_pads)                                   # [L,F,F]
        b_stack = jnp.stack(b_pads).reshape(num_total, 1, f_pad)      # [L,1,F]
        out = gcn_forward_fused(a_pad, h, w_stack, b_stack,
                                phys_vmem=phys_vmem)                  # f32
    else:
        tile_m = ROW_TILE
        variant = tiled_kernel
        if variant == "auto":
            rows_bytes = _rows_vmem_bytes(tile_m, npad, f_pad)
            variant = "rows" if rows_bytes <= int(phys_vmem * 0.6) else "ksplit"
        tile_k = _choose_tile_k(npad)
        for idx, (wp, bp) in enumerate(zip(w_pads, b_pads)):
            # Final layer written in f32 to match fused path / reference.
            out_dtype = jnp.float32 if idx == num_total - 1 else jnp.bfloat16
            if variant == "rows":
                h = gcn_layer_rows(a_pad, h, wp, bp.reshape(1, f_pad),
                                   tile_m=tile_m, out_dtype=out_dtype,
                                   phys_vmem=phys_vmem)
            else:
                h = gcn_layer_ksplit(a_pad, h, wp, bp.reshape(1, f_pad),
                                     tile_m=tile_m, tile_k=tile_k,
                                     out_dtype=out_dtype, phys_vmem=phys_vmem)
        out = h

    return out[:n, :f_out_final]


# Pure-JAX reference mirroring the kernel's bf16-operand / f32-accumulate path.
def reference_forward(x, edge_index, params):
    n = x.shape[0]
    src, dst = edge_index[0], edge_index[1]
    adj = jnp.zeros((n, n), jnp.float32).at[dst, src].set(1.0)
    adj = jnp.maximum(adj, jnp.eye(n, dtype=jnp.float32))
    deg = jnp.sum(adj, axis=1)
    dinv = jnp.where(deg > 0, jax.lax.rsqrt(deg), 0.0)
    a = (dinv[:, None] * adj * dinv[None, :]).astype(jnp.bfloat16)

    h = x.astype(jnp.bfloat16)
    out = None
    for (w, b) in params:
        ah = jnp.dot(a, h, preferred_element_type=jnp.float32)
        z = jnp.dot(ah.astype(jnp.bfloat16), w.astype(jnp.bfloat16),
                    preferred_element_type=jnp.float32)
        act = jnp.maximum(z + b[None, :], 0.0)
        out = act
        h = act.astype(jnp.bfloat16)
    return out


def _dense_edge_index(n):
    ii, jj = jnp.meshgrid(jnp.arange(n), jnp.arange(n), indexing="ij")
    return jnp.stack([ii.reshape(-1), jj.reshape(-1)], axis=0)


# ----------------------------------------------------------------------------
# Example run
# ----------------------------------------------------------------------------
if __name__ == "__main__":
    key = jax.random.PRNGKey(0)
    input_dim, hidden_dim, num_layers = 16, 32, 2

    kx, kp = jax.random.split(key)
    params = init_params(kp, input_dim, hidden_dim, num_layers)

    # ---- test 1: small fully-connected graph -> fused (A-resident) path ----
    n1 = 8
    x1 = jax.random.normal(kx, (n1, input_dim), jnp.float32)
    ei1 = _dense_edge_index(n1)                    # dense_to_sparse(ones)

    out1 = graph_autoencoder_forward(x1, ei1, params)
    out1 = jax.block_until_ready(out1)
    ref1 = reference_forward(x1, ei1, params)
    assert out1.shape == (n1, input_dim)
    assert jnp.allclose(out1, ref1, atol=2e-2, rtol=5e-2)

    # ---- test 2: force tiled row-slab path (tile_m=512, full-K, no acc) ----
    n2 = 300
    x2 = jax.random.normal(jax.random.fold_in(key, 7), (n2, input_dim), jnp.float32)
    ei2 = _dense_edge_index(n2)

    out2 = graph_autoencoder_forward(x2, ei2, params, fused_max_nodes=0)
    out2 = jax.block_until_ready(out2)
    ref2 = reference_forward(x2, ei2, params)
    assert out2.shape == (n2, input_dim)
    assert jnp.allclose(out2, ref2, atol=2e-2, rtol=5e-2)

    # ---- test 3: force tiled k-split path (grid 3x3, f32 accumulator) ------
    n3 = 1200
    x3 = jax.random.normal(jax.random.fold_in(key, 13), (n3, input_dim), jnp.float32)
    ei3 = _dense_edge_index(n3)

    out3 = graph_autoencoder_forward(x3, ei3, params, fused_max_nodes=0,
                                     tiled_kernel="ksplit")
    out3 = jax.block_until_ready(out3)
    ref3 = reference_forward(x3, ei3, params)
    assert out3.shape == (n3, input_dim)
    assert jnp.allclose(out3, ref3, atol=2e-2, rtol=5e-2)

    print("KERNEL_OK")
</pallas_src>

<mosaic_0001>
module attributes {stable_mosaic.version = 11 : i64} {
  func.func @_gcn_fused_kernel(%arg0: i32, %arg1: memref<128x128xbf16, #tpu.memory_space<any>>, %arg2: memref<128x128xbf16, #tpu.memory_space<vmem>>, %arg3: memref<4x128x128xbf16, #tpu.memory_space<vmem>>, %arg4: memref<4x1x128xf32, #tpu.memory_space<vmem>>, %arg5: memref<128x128xf32, #tpu.memory_space<vmem>>, %arg6: memref<128x128xbf16, #tpu.memory_space<vmem>>, %arg7: memref<128x128xbf16, #tpu.memory_space<vmem>>) attributes {dimension_semantics = [#tpu.dimension_semantics<arbitrary>], iteration_bounds = array<i64: 1>, scalar_prefetch = 0 : i64, scratch_operands = 2 : i64, tpu.core_type = #tpu.core_type<tc>, window_params = [{}, {pipeline_mode = #tpu.pipeline_mode<synchronous>, transform_indices = @transform_1, window_bounds = array<i64: 128, 128>}, {pipeline_mode = #tpu.pipeline_mode<synchronous>, transform_indices = @transform_2, window_bounds = array<i64: 4, 128, 128>}, {pipeline_mode = #tpu.pipeline_mode<synchronous>, transform_indices = @transform_3, window_bounds = array<i64: 4, 1, 128>}, {pipeline_mode = #tpu.pipeline_mode<synchronous>, transform_indices = @transform_4, window_bounds = array<i64: 128, 128>}]} {
    "tpu.region"() ({
      %17 = tpu.sem_alloc : memref<!tpu.dma_semaphore, #tpu.memory_space<semaphore_mem>>
      tpu.enqueue_dma source(%arg1 : memref<128x128xbf16, #tpu.memory_space<any>>) target(%arg6 : memref<128x128xbf16, #tpu.memory_space<vmem>>) target_semaphore(%17 : memref<!tpu.dma_semaphore, #tpu.memory_space<semaphore_mem>>)
      tpu.wait_dma2 semaphore(%17 : memref<!tpu.dma_semaphore, #tpu.memory_space<semaphore_mem>>) src(%arg1 : memref<128x128xbf16, #tpu.memory_space<any>>) dst(%arg6 : memref<128x128xbf16, #tpu.memory_space<vmem>>)
      tpu.yield
    }) : () -> ()
    %c0 = arith.constant 0 : index
    %c0_0 = arith.constant 0 : index
    %0 = vector.load %arg2[%c0, %c0_0] : memref<128x128xbf16, #tpu.memory_space<vmem>>, vector<128x128xbf16>
    %c0_1 = arith.constant 0 : index
    %c0_2 = arith.constant 0 : index
    %1 = vector.load %arg7[%c0_1, %c0_2] : memref<128x128xbf16, #tpu.memory_space<vmem>>, vector<128x128xbf16>
    tpu.vector_store %arg7[%c0_1, %c0_2], %0 {strides = array<i32>} : memref<128x128xbf16, #tpu.memory_space<vmem>>, vector<128x128xbf16>,
    %c0_i32 = arith.constant 0 : i32
    %c3_i32 = arith.constant 3 : i32
    %2 = arith.addi %c0_i32, %c3_i32 : i32
    %c1_i32 = arith.constant 1 : i32
    scf.for %arg8 = %c0_i32 to %2 step %c1_i32  : i32 {
      %c0_17 = arith.constant 0 : index
      %c0_18 = arith.constant 0 : index
      %17 = vector.load %arg6[%c0_17, %c0_18] : memref<128x128xbf16, #tpu.memory_space<vmem>>, vector<128x128xbf16>
      %c0_19 = arith.constant 0 : index
      %c0_20 = arith.constant 0 : index
      %18 = vector.load %arg7[%c0_19, %c0_20] : memref<128x128xbf16, #tpu.memory_space<vmem>>, vector<128x128xbf16>
      %cst_21 = arith.constant dense<0.000000e+00> : vector<128x128xf32>
      %19 = tpu.matmul %17, %18, %cst_21 {dimension_numbers = #tpu.dot_dimension_numbers<[1], [0], [0], [1], [0, 0, 1, 1], [], []>} : vector<128x128xbf16>, vector<128x128xbf16>, vector<128x128xf32> -> vector<128x128xf32>
      %20 = arith.truncf %19 : vector<128x128xf32> to vector<128x128xbf16>
      %21 = arith.index_cast %arg8 : i32 to index
      %c0_22 = arith.constant 0 : index
      %c0_23 = arith.constant 0 : index
      %22 = vector.load %arg3[%21, %c0_22, %c0_23] : memref<4x128x128xbf16, #tpu.memory_space<vmem>>, vector<1x128x128xbf16>
      %23 = vector.shape_cast %22 : vector<1x128x128xbf16> to vector<128x128xbf16>
      %cst_24 = arith.constant dense<0.000000e+00> : vector<128x128xf32>
      %24 = tpu.matmul %20, %23, %cst_24 {dimension_numbers = #tpu.dot_dimension_numbers<[1], [0], [0], [1], [0, 0, 1, 1], [], []>} : vector<128x128xbf16>, vector<128x128xbf16>, vector<128x128xf32> -> vector<128x128xf32>
      %25 = arith.index_cast %arg8 : i32 to index
      %c0_25 = arith.constant 0 : index
      %c0_26 = arith.constant 0 : index
      %26 = vector.load %arg4[%25, %c0_25, %c0_26] : memref<4x1x128xf32, #tpu.memory_space<vmem>>, vector<1x1x128xf32>
      %27 = vector.shape_cast %26 : vector<1x1x128xf32> to vector<1x128xf32>
      %28 = vector.broadcast %27 : vector<1x128xf32> to vector<128x128xf32>
      %29 = arith.addf %24, %28 : vector<128x128xf32>
      %cst_27 = arith.constant 0.000000e+00 : f32
      %30 = vector.broadcast %cst_27 : f32 to vector<128x128xf32>
      %31 = arith.maximumf %29, %30 : vector<128x128xf32>
      %32 = arith.truncf %31 : vector<128x128xf32> to vector<128x128xbf16>
      %c0_28 = arith.constant 0 : index
      %c0_29 = arith.constant 0 : index
      %33 = vector.load %arg7[%c0_28, %c0_29] : memref<128x128xbf16, #tpu.memory_space<vmem>>, vector<128x128xbf16>
      tpu.vector_store %arg7[%c0_28, %c0_29], %32 {strides = array<i32>} : memref<128x128xbf16, #tpu.memory_space<vmem>>, vector<128x128xbf16>,
    }
    %c3_i32_3 = arith.constant 3 : i32
    %c0_4 = arith.constant 0 : index
    %c0_5 = arith.constant 0 : index
    %3 = vector.load %arg6[%c0_4, %c0_5] : memref<128x128xbf16, #tpu.memory_space<vmem>>, vector<128x128xbf16>
    %c0_6 = arith.constant 0 : index
    %c0_7 = arith.constant 0 : index
    %4 = vector.load %arg7[%c0_6, %c0_7] : memref<128x128xbf16, #tpu.memory_space<vmem>>, vector<128x128xbf16>
    %cst = arith.constant dense<0.000000e+00> : vector<128x128xf32>
    %5 = tpu.matmul %3, %4, %cst {dimension_numbers = #tpu.dot_dimension_numbers<[1], [0], [0], [1], [0, 0, 1, 1], [], []>} : vector<128x128xbf16>, vector<128x128xbf16>, vector<128x128xf32> -> vector<128x128xf32>
    %6 = arith.truncf %5 : vector<128x128xf32> to vector<128x128xbf16>
    %c3 = arith.constant 3 : index
    %c0_8 = arith.constant 0 : index
    %c0_9 = arith.constant 0 : index
    %7 = vector.load %arg3[%c3, %c0_8, %c0_9] : memref<4x128x128xbf16, #tpu.memory_space<vmem>>, vector<1x128x128xbf16>
    %8 = vector.shape_cast %7 : vector<1x128x128xbf16> to vector<128x128xbf16>
    %cst_10 = arith.constant dense<0.000000e+00> : vector<128x128xf32>
    %9 = tpu.matmul %6, %8, %cst_10 {dimension_numbers = #tpu.dot_dimension_numbers<[1], [0], [0], [1], [0, 0, 1, 1], [], []>} : vector<128x128xbf16>, vector<128x128xbf16>, vector<128x128xf32> -> vector<128x128xf32>
    %c3_11 = arith.constant 3 : index
    %c0_12 = arith.constant 0 : index
    %c0_13 = arith.constant 0 : index
    %10 = vector.load %arg4[%c3_11, %c0_12, %c0_13] : memref<4x1x128xf32, #tpu.memory_space<vmem>>, vector<1x1x128xf32>
    %11 = vector.shape_cast %10 : vector<1x1x128xf32> to vector<1x128xf32>
    %12 = vector.broadcast %11 : vector<1x128xf32> to vector<128x128xf32>
    %13 = arith.addf %9, %12 : vector<128x128xf32>
    %cst_14 = arith.constant 0.000000e+00 : f32
    %14 = vector.broadcast %cst_14 : f32 to vector<128x128xf32>
    %15 = arith.maximumf %13, %14 : vector<128x128xf32>
    %c0_15 = arith.constant 0 : index
    %c0_16 = arith.constant 0 : index
    %16 = vector.load %arg5[%c0_15, %c0_16] : memref<128x128xf32, #tpu.memory_space<vmem>>, vector<128x128xf32>
    tpu.vector_store %arg5[%c0_15, %c0_16], %15 {strides = array<i32>} : memref<128x128xf32, #tpu.memory_space<vmem>>, vector<128x128xf32>,
    return
  }
  func.func @transform_1(%arg0: i32) -> (i32, i32) {
    %c0_i32 = arith.constant 0 : i32
    %c0_i32_0 = arith.constant 0 : i32
    %c0_i32_1 = arith.constant 0 : i32
    return %c0_i32, %c0_i32_0 : i32, i32
  }
  func.func @transform_2(%arg0: i32) -> (i32, i32, i32) {
    %c0_i32 = arith.constant 0 : i32
    %c0_i32_0 = arith.constant 0 : i32
    %c0_i32_1 = arith.constant 0 : i32
    %c0_i32_2 = arith.constant 0 : i32
    return %c0_i32, %c0_i32_0, %c0_i32_1 : i32, i32, i32
  }
  func.func @transform_3(%arg0: i32) -> (i32, i32, i32) {
    %c0_i32 = arith.constant 0 : i32
    %c0_i32_0 = arith.constant 0 : i32
    %c0_i32_1 = arith.constant 0 : i32
    %c0_i32_2 = arith.constant 0 : i32
    return %c0_i32, %c0_i32_0, %c0_i32_1 : i32, i32, i32
  }
  func.func @transform_4(%arg0: i32) -> (i32, i32) {
    %c0_i32 = arith.constant 0 : i32
    %c0_i32_0 = arith.constant 0 : i32
    %c0_i32_1 = arith.constant 0 : i32
    return %c0_i32, %c0_i32_0 : i32, i32
  }
}

</mosaic_0001>

<llo_original>
// kernel: graph_autoencoder_forward.1
$region0: #{graph_autoencoder_forward.1}
  #allocation0 [shape = 'u32[]', space=smem, size = 0x4, offset = 0x4, fixed_abs, tag = 'smem constant byte address 0x4 - core index']
  #allocation1 [shape = 'u32[144,128]{1,0:T(1,128)}', space=vmem, size = 0x12000, scoped, tag = 'internal scratch']
  #allocation2 [shape = 'bf16[128,128]{1,0:T(8,128)(2,1)}', space=vmem, size = 0x8000, scoped, tag = 'scratch operand']
  #allocation3 [shape = 'bf16[128,128]{1,0:T(8,128)(2,1)}', space=vmem, size = 0x8000, scoped, tag = 'scratch operand']
  #allocation5 [shape = 's32[]', space=sflag, size = 0x4, offset = 0, fixed_abs, tag = 'sflag constant byte address 0x0 - dummy sync flag']
  %s0 = inlined_call_operand.vmem [shape: bf16[128,128], index: 0, kind: input, shape index: {}]
  %s1 = inlined_call_operand.vmem [shape: bf16[128,128], index: 1, kind: input, shape index: {}]
  %s2 = inlined_call_operand.vmem [shape: bf16[4,128,128], index: 2, kind: input, shape index: {}]
  %s3 = inlined_call_operand.vmem [shape: f32[4,1,128], index: 3, kind: input, shape index: {}]
  %s4 = inlined_call_operand.vmem [shape: f32[128,128], index: 4, kind: output, shape index: {}]
  %s5 = sld [smem:[#allocation0]]
  $region64: #{graph_autoencoder_forward.1} parent=0
    _
  %s7 = ssub.s32 1, %s5
  %s8 = scalar_select 0, %s7, %s5
  // Predicated region
  $region2: #{graph_autoencoder_forward.1} parent=0 // pred_check
    _
  $region3: #{graph_autoencoder_forward.1} parent=0 // pred_check_branch
    %10 = sbr.rel (0) target = $region5
  $region4: #{graph_autoencoder_forward.1} parent=0 // pred_region
    _
  $region5: #{graph_autoencoder_forward.1} parent=0 // pred_fallthru
    _
  // Predicated region
  $region6: #{graph_autoencoder_forward.1} parent=0 // pred_check
    _
  $region7: #{graph_autoencoder_forward.1} parent=0 // pred_check_branch
    %12 = sbr.rel (0) target = $region9
  $region8: #{graph_autoencoder_forward.1} parent=0 // pred_region
    _
  $region9: #{graph_autoencoder_forward.1} parent=0 // pred_fallthru
    _
  // Predicated region
  $region10: #{graph_autoencoder_forward.1} parent=0 // pred_check
    _
  $region11: #{graph_autoencoder_forward.1} parent=0 // pred_check_branch
    %14 = sbr.rel (0) target = $region13
  $region12: #{graph_autoencoder_forward.1} parent=0 // pred_region
    _
  $region13: #{graph_autoencoder_forward.1} parent=0 // pred_fallthru
    _
  $region14: #{graph_autoencoder_forward.1} parent=0
    #allocation4 [shape = 's32[1]{0}', space=sflag, size = 0x4, scoped, tag = 'scoped memory for graph_autoencoder_forward.1']
    %p17 = scmp.lt.u32.totalorder 64, 8
    %p18 = pneg %p17
    // Predicated region
    $region15: #{graph_autoencoder_forward.1} parent=14 // pred_check
      _
    $region16: #{graph_autoencoder_forward.1} parent=14 // pred_check_branch
      %20 = sbr.rel (%p17) target = $region18
    $region17: #{graph_autoencoder_forward.1} parent=14 // pred_region
      %s36 = sand.u32 64, 7
      %p37 = scmp.eq.s32.totalorder %s36, 0
      // Predicated region
      $region30: #{graph_autoencoder_forward.1} parent=17 // pred_check
        %p38 = pneg %p37
      $region31: #{graph_autoencoder_forward.1} parent=17 // pred_check_branch
        %40 = sbr.rel (%p38) target = $region33
      $region32: #{graph_autoencoder_forward.1} parent=17 // pred_region
        loop: start=0, step=1, limit=1
        $region34: #{graph_autoencoder_forward.1} parent=32 // loop_pre_header
          _
        $region35: #{graph_autoencoder_forward.1} parent=32 // loop_header
          %s42 = sphi 0, %s46
          %p43 = scmp.ge.s32.totalorder %s42, 1
          %s47 = sphi %s0, %s0
          %s48 = sphi [#allocation2], [#allocation2]
        $region36: #{graph_autoencoder_forward.1} parent=32 // loop_header_branch
          %45 = sbr.rel (%p43) target = $region40
        $region37: #{graph_autoencoder_forward.1} parent=32 // loop_body
          %v49 = vld [vmem:[%s47] sm:$0xff]
          %50 = vst [vmem:[%s48] sm:$0xff] %v49
          %v51 = vld [vmem:[%s47 + $0x8] sm:$0xff]
          %52 = vst [vmem:[%s48 + $0x8] sm:$0xff] %v51
          %v53 = vld [vmem:[%s47 + $0x10] sm:$0xff]
          %54 = vst [vmem:[%s48 + $0x10] sm:$0xff] %v53
          %v55 = vld [vmem:[%s47 + $0x18] sm:$0xff]
          %56 = vst [vmem:[%s48 + $0x18] sm:$0xff] %v55
          %v57 = vld [vmem:[%s47 + $0x20] sm:$0xff]
          %58 = vst [vmem:[%s48 + $0x20] sm:$0xff] %v57
          %v59 = vld [vmem:[%s47 + $0x28] sm:$0xff]
          %60 = vst [vmem:[%s48 + $0x28] sm:$0xff] %v59
          %v61 = vld [vmem:[%s47 + $0x30] sm:$0xff]
          %62 = vst [vmem:[%s48 + $0x30] sm:$0xff] %v61
          %v63 = vld [vmem:[%s47 + $0x38] sm:$0xff]
          %64 = vst [vmem:[%s48 + $0x38] sm:$0xff] %v63
        $region38: #{graph_autoencoder_forward.1} parent=32 // loop_footer
          %s46 = sadd.s32 1, %s42
        $region39: #{graph_autoencoder_forward.1} parent=32 // loop_footer_branch
          %41 = sbr.rel target = $region35
        $region40: #{graph_autoencoder_forward.1} parent=32 // loop_exit
          _
      $region33: #{graph_autoencoder_forward.1} parent=17 // pred_fallthru
        _
      %p65 = pneg %p37
      // Predicated region
      $region41: #{graph_autoencoder_forward.1} parent=17 // pred_check
        _
      $region42: #{graph_autoencoder_forward.1} parent=17 // pred_check_branch
        %67 = sbr.rel (%p37) target = $region44
      $region43: #{graph_autoencoder_forward.1} parent=17 // pred_region
        %s68 = sand.u32 64, 7
      $region44: #{graph_autoencoder_forward.1} parent=17 // pred_fallthru
        _
    $region18: #{graph_autoencoder_forward.1} parent=14 // pred_fallthru
      _
    // Predicated region
    $region19: #{graph_autoencoder_forward.1} parent=14 // pred_check
      %p21 = pneg %p17
    $region20: #{graph_autoencoder_forward.1} parent=14 // pred_check_branch
      %23 = sbr.rel (%p21) target = $region22
    $region21: #{graph_autoencoder_forward.1} parent=14 // pred_region
      %s24 = sshll.u32 1, 64
      %s25 = ssub.s32 %s24, 1
      loop: start=0, step=1, limit=1
      $region23: #{graph_autoencoder_forward.1} parent=21 // loop_pre_header
        _
      $region24: #{graph_autoencoder_forward.1} parent=21 // loop_header
        %s27 = sphi 0, %s31
        %p28 = scmp.ge.s32.totalorder %s27, 1
        %s32 = sphi %s0, %s0
        %s33 = sphi [#allocation2], [#allocation2]
      $region25: #{graph_autoencoder_forward.1} parent=21 // loop_header_branch
        %30 = sbr.rel (%p28) target = $region29
      $region26: #{graph_autoencoder_forward.1} parent=21 // loop_body
        %v34 = vld [vmem:[%s32] sm:%s25]
        %35 = vst [vmem:[%s33] sm:%s25] %v34
      $region27: #{graph_autoencoder_forward.1} parent=21 // loop_footer
        %s31 = sadd.s32 1, %s27
      $region28: #{graph_autoencoder_forward.1} parent=21 // loop_footer_branch
        %26 = sbr.rel target = $region24
      $region29: #{graph_autoencoder_forward.1} parent=21 // loop_exit
        _
    $region22: #{graph_autoencoder_forward.1} parent=14 // pred_fallthru
      _
    // Predicated region
    $region45: #{graph_autoencoder_forward.1} parent=14 // pred_check
      _
    $region46: #{graph_autoencoder_forward.1} parent=14 // pred_check_branch
      %71 = sbr.rel (0) target = $region48
    $region47: #{graph_autoencoder_forward.1} parent=14 // pred_region
      %72 = vsyncadd [#allocation4], 1024
    $region48: #{graph_autoencoder_forward.1} parent=14 // pred_fallthru
      _
    %s73 = smul.u32 4, 16
    %s74 = smul.u32 %s73, 1
    %s75 = sshll.u32 %s74, 4
    %76 = dma.done [#allocation4], %s75
  %v77 = vld [vmem:[%s1] sm:$0xf]
  %v78 = vld [vmem:[%s1 + $0x4] sm:$0xf]
  %v79 = vld [vmem:[%s1 + $0x8] sm:$0xf]
  %v80 = vld [vmem:[%s1 + $0xc] sm:$0xf]
  %v81 = vld [vmem:[%s1 + $0x10] sm:$0xf]
  %v82 = vld [vmem:[%s1 + $0x14] sm:$0xf]
  %v83 = vld [vmem:[%s1 + $0x18] sm:$0xf]
  %v84 = vld [vmem:[%s1 + $0x1c] sm:$0xf]
  %v85 = vld [vmem:[%s1 + $0x20] sm:$0xf]
  %v86 = vld [vmem:[%s1 + $0x24] sm:$0xf]
  %v87 = vld [vmem:[%s1 + $0x28] sm:$0xf]
  %v88 = vld [vmem:[%s1 + $0x2c] sm:$0xf]
  %v89 = vld [vmem:[%s1 + $0x30] sm:$0xf]
  %v90 = vld [vmem:[%s1 + $0x34] sm:$0xf]
  %v91 = vld [vmem:[%s1 + $0x38] sm:$0xf]
  %v92 = vld [vmem:[%s1 + $0x3c] sm:$0xf]
  %93 = vst [vmem:[#allocation3] sm:$0xf] %v77
  %94 = vst [vmem:[#allocation3 + $0x4] sm:$0xf] %v78
  %95 = vst [vmem:[#allocation3 + $0x8] sm:$0xf] %v79
  %96 = vst [vmem:[#allocation3 + $0xc] sm:$0xf] %v80
  %97 = vst [vmem:[#allocation3 + $0x10] sm:$0xf] %v81
  %98 = vst [vmem:[#allocation3 + $0x14] sm:$0xf] %v82
  %99 = vst [vmem:[#allocation3 + $0x18] sm:$0xf] %v83
  %100 = vst [vmem:[#allocation3 + $0x1c] sm:$0xf] %v84
  %101 = vst [vmem:[#allocation3 + $0x20] sm:$0xf] %v85
  %102 = vst [vmem:[#allocation3 + $0x24] sm:$0xf] %v86
  %103 = vst [vmem:[#allocation3 + $0x28] sm:$0xf] %v87
  %104 = vst [vmem:[#allocation3 + $0x2c] sm:$0xf] %v88
  %105 = vst [vmem:[#allocation3 + $0x30] sm:$0xf] %v89
  %106 = vst [vmem:[#allocation3 + $0x34] sm:$0xf] %v90
  %107 = vst [vmem:[#allocation3 + $0x38] sm:$0xf] %v91
  %108 = vst [vmem:[#allocation3 + $0x3c] sm:$0xf] %v92
  loop: start=0, step=1, limit=3
  $region49: #{graph_autoencoder_forward.1} parent=0 // loop_pre_header
    _
  $region50: #{graph_autoencoder_forward.1} parent=0 // loop_header
    %s110 = sphi 0, %s114
    %p111 = scmp.ge.s32.totalorder %s110, 3
  $region51: #{graph_autoencoder_forward.1} parent=0 // loop_header_branch
    %113 = sbr.rel (%p111) target = $region55
  $region52: #{graph_autoencoder_forward.1} parent=0 // loop_body
    %v115 = vld [vmem:[#allocation2] sm:$0xf]
    %v116 = vld [vmem:[#allocation2 + $0x4] sm:$0xf]
    %v117 = vld [vmem:[#allocation2 + $0x8] sm:$0xf]
    %v118 = vld [vmem:[#allocation2 + $0xc] sm:$0xf]
    %v119 = vld [vmem:[#allocation2 + $0x10] sm:$0xf]
    %v120 = vld [vmem:[#allocation2 + $0x14] sm:$0xf]
    %v121 = vld [vmem:[#allocation2 + $0x18] sm:$0xf]
    %v122 = vld [vmem:[#allocation2 + $0x1c] sm:$0xf]
    %v123 = vld [vmem:[#allocation2 + $0x20] sm:$0xf]
    %v124 = vld [vmem:[#allocation2 + $0x24] sm:$0xf]
    %v125 = vld [vmem:[#allocation2 + $0x28] sm:$0xf]
    %v126 = vld [vmem:[#allocation2 + $0x2c] sm:$0xf]
    %v127 = vld [vmem:[#allocation2 + $0x30] sm:$0xf]
    %v128 = vld [vmem:[#allocation2 + $0x34] sm:$0xf]
    %v129 = vld [vmem:[#allocation2 + $0x38] sm:$0xf]
    %v130 = vld [vmem:[#allocation2 + $0x3c] sm:$0xf]
    %v131 = vld [vmem:[#allocation3] sm:$0xf]
    %v132 = vld [vmem:[#allocation3 + $0x4] sm:$0xf]
    %v133 = vld [vmem:[#allocation3 + $0x8] sm:$0xf]
    %v134 = vld [vmem:[#allocation3 + $0xc] sm:$0xf]
    %v135 = vld [vmem:[#allocation3 + $0x10] sm:$0xf]
    %v136 = vld [vmem:[#allocation3 + $0x14] sm:$0xf]
    %v137 = vld [vmem:[#allocation3 + $0x18] sm:$0xf]
    %v138 = vld [vmem:[#allocation3 + $0x1c] sm:$0xf]
    %v139 = vld [vmem:[#allocation3 + $0x20] sm:$0xf]
    %v140 = vld [vmem:[#allocation3 + $0x24] sm:$0xf]
    %v141 = vld [vmem:[#allocation3 + $0x28] sm:$0xf]
    %v142 = vld [vmem:[#allocation3 + $0x2c] sm:$0xf]
    %v143 = vld [vmem:[#allocation3 + $0x30] sm:$0xf]
    %v144 = vld [vmem:[#allocation3 + $0x34] sm:$0xf]
    %v145 = vld [vmem:[#allocation3 + $0x38] sm:$0xf]
    %v146 = vld [vmem:[#allocation3 + $0x3c] sm:$0xf]
    %v163 = vunpack.c.l.b16 %v115
    %v164 = vunpack.c.l.b16 %v116
    %v165 = vunpack.c.l.b16 %v117
    %v166 = vunpack.c.l.b16 %v118
    %v167 = vunpack.c.l.b16 %v119
    %v168 = vunpack.c.l.b16 %v120
    %v169 = vunpack.c.l.b16 %v121
    %v170 = vunpack.c.l.b16 %v122
    %v171 = vunpack.c.l.b16 %v123
    %v172 = vunpack.c.l.b16 %v124
    %v173 = vunpack.c.l.b16 %v125
    %v174 = vunpack.c.l.b16 %v126
    %v175 = vunpack.c.l.b16 %v127
    %v176 = vunpack.c.l.b16 %v128
    %v177 = vunpack.c.l.b16 %v129
    %v178 = vunpack.c.l.b16 %v130
    %v179 = vpack.c.b16 %v164, %v163
    %v180 = vpack.c.b16 %v166, %v165
    %v181 = vpack.c.b16 %v168, %v167
    %v182 = vpack.c.b16 %v170, %v169
    %v183 = vpack.c.b16 %v172, %v171
    %v184 = vpack.c.b16 %v174, %v173
    %v185 = vpack.c.b16 %v176, %v175
    %v186 = vpack.c.b16 %v178, %v177
    %v211 = vunpack.c.l.b16 %v131
    %v212 = vunpack.c.l.b16 %v132
    %v213 = vunpack.c.l.b16 %v133
    %v214 = vunpack.c.l.b16 %v134
    %v215 = vunpack.c.l.b16 %v135
    %v216 = vunpack.c.l.b16 %v136
    %v217 = vunpack.c.l.b16 %v137
    %v218 = vunpack.c.l.b16 %v138
    %v219 = vunpack.c.l.b16 %v139
    %v220 = vunpack.c.l.b16 %v140
    %v221 = vunpack.c.l.b16 %v141
    %v222 = vunpack.c.l.b16 %v142
    %v223 = vunpack.c.l.b16 %v143
    %v224 = vunpack.c.l.b16 %v144
    %v225 = vunpack.c.l.b16 %v145
    %v226 = vunpack.c.l.b16 %v146
    %v227 = vpack.c.b16 %v212, %v211
    %v228 = vpack.c.b16 %v214, %v213
    %v229 = vpack.c.b16 %v216, %v215
    %v230 = vpack.c.b16 %v218, %v217
    %v231 = vpack.c.b16 %v220, %v219
    %v232 = vpack.c.b16 %v222, %v221
    %v233 = vpack.c.b16 %v224, %v223
    %v234 = vpack.c.b16 %v226, %v225
    %243 = vmatprep.subr.bf16.mxu0 0
    %244 = vmatpush1.bf16.msra.mxu0 %v234
    %245 = vmatprep.subr.bf16.mxu0 0
    %246 = vmatpush1.bf16.msra.mxu0 %v233
    %247 = vmatprep.subr.bf16.mxu0 0
    %248 = vmatpush1.bf16.msra.mxu0 %v232
    %249 = vmatprep.subr.bf16.mxu0 0
    %250 = vmatpush1.bf16.msra.mxu0 %v231
    %251 = vmatprep.subr.bf16.mxu0 0
    %252 = vmatpush1.bf16.msra.mxu0 %v230
    %253 = vmatprep.subr.bf16.mxu0 0
    %254 = vmatpush1.bf16.msra.mxu0 %v229
    %255 = vmatprep.subr.bf16.mxu0 0
    %256 = vmatpush1.bf16.msra.mxu0 %v228
    %257 = vmatprep.subr.bf16.mxu0 0
    %258 = vmatpush1.bf16.msra.mxu0 %v227
    %259 = vmatprep.subr.bf16.mxu0 0
    %260 = vmatpush2.bf16.msra.mxu0 0
    %261 = vmatprep.subr.bf16.mxu0 0
    %262 = vmatpush2.bf16.msra.mxu0 0
    %263 = vmatprep.subr.bf16.mxu0 0
    %264 = vmatpush2.bf16.msra.mxu0 0
    %265 = vmatprep.subr.bf16.mxu0 0
    %266 = vmatpush2.bf16.msra.mxu0 0
    %267 = vmatprep.subr.bf16.mxu0 0
    %268 = vmatpush2.bf16.msra.mxu0 0
    %269 = vmatprep.subr.bf16.mxu0 0
    %270 = vmatpush2.bf16.msra.mxu0 0
    %271 = vmatprep.subr.bf16.mxu0 0
    %272 = vmatpush2.bf16.msra.mxu0 0
    %273 = vmatprep.subr.bf16.mxu0 0
    %274 = vmatpush2.bf16.msra.mxu0 0
    %275 = vmatprep.mubr.bf16.mxu0 0
    %276 = vmatmul.mubr.bf16.gmra.mxu0 %v179
    %v277 = vpop.f32.mrf.mxu0
    %v278 = vadd.f32 0.0, %v277
    %v279 = vpop.f32.mrf.mxu0
    %v280 = vpop.f32.mrf.mxu0
    %v281 = vadd.f32 0.0, %v280
    %v282 = vpop.f32.mrf.mxu0
    %283 = vmatprep.mubr.bf16.mxu0 0
    %284 = vmatmul.mubr.bf16.gmra.mxu0 %v180
    %v285 = vpop.f32.mrf.mxu0
    %v286 = vadd.f32 0.0, %v285
    %v287 = vpop.f32.mrf.mxu0
    %v288 = vpop.f32.mrf.mxu0
    %v289 = vadd.f32 0.0, %v288
    %v290 = vpop.f32.mrf.mxu0
    %291 = vmatprep.mubr.bf16.mxu0 0
    %292 = vmatmul.mubr.bf16.gmra.mxu0 %v181
    %v293 = vpop.f32.mrf.mxu0
    %v294 = vadd.f32 0.0, %v293
    %v295 = vpop.f32.mrf.mxu0
    %v296 = vpop.f32.mrf.mxu0
    %v297 = vadd.f32 0.0, %v296
    %v298 = vpop.f32.mrf.mxu0
    %299 = vmatprep.mubr.bf16.mxu0 0
    %300 = vmatmul.mubr.bf16.gmra.mxu0 %v182
    %v301 = vpop.f32.mrf.mxu0
    %v302 = vadd.f32 0.0, %v301
    %v303 = vpop.f32.mrf.mxu0
    %v304 = vpop.f32.mrf.mxu0
    %v305 = vadd.f32 0.0, %v304
    %v306 = vpop.f32.mrf.mxu0
    %307 = vmatprep.mubr.bf16.mxu0 0
    %308 = vmatmul.mubr.bf16.gmra.mxu0 %v183
    %v309 = vpop.f32.mrf.mxu0
    %v310 = vadd.f32 0.0, %v309
    %v311 = vpop.f32.mrf.mxu0
    %v312 = vpop.f32.mrf.mxu0
    %v313 = vadd.f32 0.0, %v312
    %v314 = vpop.f32.mrf.mxu0
    %315 = vmatprep.mubr.bf16.mxu0 0
    %316 = vmatmul.mubr.bf16.gmra.mxu0 %v184
    %v317 = vpop.f32.mrf.mxu0
    %v318 = vadd.f32 0.0, %v317
    %v319 = vpop.f32.mrf.mxu0
    %v320 = vpop.f32.mrf.mxu0
    %v321 = vadd.f32 0.0, %v320
    %v322 = vpop.f32.mrf.mxu0
    %323 = vmatprep.mubr.bf16.mxu0 0
    %324 = vmatmul.mubr.bf16.gmra.mxu0 %v185
    %v325 = vpop.f32.mrf.mxu0
    %v326 = vadd.f32 0.0, %v325
    %v327 = vpop.f32.mrf.mxu0
    %v328 = vpop.f32.mrf.mxu0
    %v329 = vadd.f32 0.0, %v328
    %v330 = vpop.f32.mrf.mxu0
    %331 = vmatprep.mubr.bf16.mxu0 0
    %332 = vmatmul.mubr.bf16.gmra.mxu0 %v186
    %v333 = vpop.f32.mrf.mxu0
    %v334 = vadd.f32 0.0, %v333
    %v335 = vpop.f32.mrf.mxu0
    %v336 = vpop.f32.mrf.mxu0
    %v337 = vadd.f32 0.0, %v336
    %v338 = vpop.f32.mrf.mxu0
    %339 = vdwg.mxu0
    %v340 = vpack.c.bf16 %v281, %v278
    %v341 = vpack.c.bf16 %v289, %v286
    %v342 = vpack.c.bf16 %v297, %v294
    %v343 = vpack.c.bf16 %v305, %v302
    %v344 = vpack.c.bf16 %v313, %v310
    %v345 = vpack.c.bf16 %v321, %v318
    %v346 = vpack.c.bf16 %v329, %v326
    %v347 = vpack.c.bf16 %v337, %v334
    %s348 = smul.u32 %s110, 16
    %s349 = smul.addr %s348, 4
    %s350 = scalar_lea.vmem %s2, %s349
    %v351 = vld [vmem:[%s350] sm:$0xf]
    %v352 = vld [vmem:[%s350 + $0x4] sm:$0xf]
    %v353 = vld [vmem:[%s350 + $0x8] sm:$0xf]
    %v354 = vld [vmem:[%s350 + $0xc] sm:$0xf]
    %v355 = vld [vmem:[%s350 + $0x10] sm:$0xf]
    %v356 = vld [vmem:[%s350 + $0x14] sm:$0xf]
    %v357 = vld [vmem:[%s350 + $0x18] sm:$0xf]
    %v358 = vld [vmem:[%s350 + $0x1c] sm:$0xf]
    %v359 = vld [vmem:[%s350 + $0x20] sm:$0xf]
    %v360 = vld [vmem:[%s350 + $0x24] sm:$0xf]
    %v361 = vld [vmem:[%s350 + $0x28] sm:$0xf]
    %v362 = vld [vmem:[%s350 + $0x2c] sm:$0xf]
    %v363 = vld [vmem:[%s350 + $0x30] sm:$0xf]
    %v364 = vld [vmem:[%s350 + $0x34] sm:$0xf]
    %v365 = vld [vmem:[%s350 + $0x38] sm:$0xf]
    %v366 = vld [vmem:[%s350 + $0x3c] sm:$0xf]
    %s367 = scalar_lea.vmem %s3, %s110
    %v368 = vld [vmem:[%s367] sm:$0x1]
    %v370 = vlaneseq
    %v371 = vshrl.u32 %v370, 7
    %v372 = vsub.s32 0, %v371
    %v373 = vrot.slane %v368, %v372
    %v391 = vunpack.c.l.b16 %v351
    %v392 = vunpack.c.l.b16 %v352
    %v393 = vunpack.c.l.b16 %v353
    %v394 = vunpack.c.l.b16 %v354
    %v395 = vunpack.c.l.b16 %v355
    %v396 = vunpack.c.l.b16 %v356
    %v397 = vunpack.c.l.b16 %v357
    %v398 = vunpack.c.l.b16 %v358
    %v399 = vunpack.c.l.b16 %v359
    %v400 = vunpack.c.l.b16 %v360
    %v401 = vunpack.c.l.b16 %v361
    %v402 = vunpack.c.l.b16 %v362
    %v403 = vunpack.c.l.b16 %v363
    %v404 = vunpack.c.l.b16 %v364
    %v405 = vunpack.c.l.b16 %v365
    %v406 = vunpack.c.l.b16 %v366
    %v407 = vpack.c.b16 %v392, %v391
    %v408 = vpack.c.b16 %v394, %v393
    %v409 = vpack.c.b16 %v396, %v395
    %v410 = vpack.c.b16 %v398, %v397
    %v411 = vpack.c.b16 %v400, %v399
    %v412 = vpack.c.b16 %v402, %v401
    %v413 = vpack.c.b16 %v404, %v403
    %v414 = vpack.c.b16 %v406, %v405
    %423 = vmatprep.subr.bf16.mxu0 0
    %424 = vmatpush1.bf16.msra.mxu0 %v414
    %425 = vmatprep.subr.bf16.mxu0 0
    %426 = vmatpush1.bf16.msra.mxu0 %v413
    %427 = vmatprep.subr.bf16.mxu0 0
    %428 = vmatpush1.bf16.msra.mxu0 %v412
    %429 = vmatprep.subr.bf16.mxu0 0
    %430 = vmatpush1.bf16.msra.mxu0 %v411
    %431 = vmatprep.subr.bf16.mxu0 0
    %432 = vmatpush1.bf16.msra.mxu0 %v410
    %433 = vmatprep.subr.bf16.mxu0 0
    %434 = vmatpush1.bf16.msra.mxu0 %v409
    %435 = vmatprep.subr.bf16.mxu0 0
    %436 = vmatpush1.bf16.msra.mxu0 %v408
    %437 = vmatprep.subr.bf16.mxu0 0
    %438 = vmatpush1.bf16.msra.mxu0 %v407
    %439 = vmatprep.subr.bf16.mxu0 0
    %440 = vmatpush2.bf16.msra.mxu0 0
    %441 = vmatprep.subr.bf16.mxu0 0
    %442 = vmatpush2.bf16.msra.mxu0 0
    %443 = vmatprep.subr.bf16.mxu0 0
    %444 = vmatpush2.bf16.msra.mxu0 0
    %445 = vmatprep.subr.bf16.mxu0 0
    %446 = vmatpush2.bf16.msra.mxu0 0
    %447 = vmatprep.subr.bf16.mxu0 0
    %448 = vmatpush2.bf16.msra.mxu0 0
    %449 = vmatprep.subr.bf16.mxu0 0
    %450 = vmatpush2.bf16.msra.mxu0 0
    %451 = vmatprep.subr.bf16.mxu0 0
    %452 = vmatpush2.bf16.msra.mxu0 0
    %453 = vmatprep.subr.bf16.mxu0 0
    %454 = vmatpush2.bf16.msra.mxu0 0
    %455 = vmatprep.mubr.bf16.mxu0 0
    %456 = vmatmul.mubr.bf16.gmra.mxu0 %v340
    %v457 = vpop.f32.mrf.mxu0
    %v458 = vadd.f32 %v373, %v457
    %v459 = vpop.f32.mrf.mxu0
    %v460 = vpop.f32.mrf.mxu0
    %v461 = vadd.f32 %v373, %v460
    %v462 = vpop.f32.mrf.mxu0
    %463 = vmatprep.mubr.bf16.mxu0 0
    %464 = vmatmul.mubr.bf16.gmra.mxu0 %v341
    %v465 = vpop.f32.mrf.mxu0
    %v466 = vadd.f32 %v373, %v465
    %v467 = vpop.f32.mrf.mxu0
    %v468 = vpop.f32.mrf.mxu0
    %v469 = vadd.f32 %v373, %v468
    %v470 = vpop.f32.mrf.mxu0
    %471 = vmatprep.mubr.bf16.mxu0 0
    %472 = vmatmul.mubr.bf16.gmra.mxu0 %v342
    %v473 = vpop.f32.mrf.mxu0
    %v474 = vadd.f32 %v373, %v473
    %v475 = vpop.f32.mrf.mxu0
    %v476 = vpop.f32.mrf.mxu0
    %v477 = vadd.f32 %v373, %v476
    %v478 = vpop.f32.mrf.mxu0
    %479 = vmatprep.mubr.bf16.mxu0 0
    %480 = vmatmul.mubr.bf16.gmra.mxu0 %v343
    %v481 = vpop.f32.mrf.mxu0
    %v482 = vadd.f32 %v373, %v481
    %v483 = vpop.f32.mrf.mxu0
    %v484 = vpop.f32.mrf.mxu0
    %v485 = vadd.f32 %v373, %v484
    %v486 = vpop.f32.mrf.mxu0
    %487 = vmatprep.mubr.bf16.mxu0 0
    %488 = vmatmul.mubr.bf16.gmra.mxu0 %v344
    %v489 = vpop.f32.mrf.mxu0
    %v490 = vadd.f32 %v373, %v489
    %v491 = vpop.f32.mrf.mxu0
    %v492 = vpop.f32.mrf.mxu0
    %v493 = vadd.f32 %v373, %v492
    %v494 = vpop.f32.mrf.mxu0
    %495 = vmatprep.mubr.bf16.mxu0 0
    %496 = vmatmul.mubr.bf16.gmra.mxu0 %v345
    %v497 = vpop.f32.mrf.mxu0
    %v498 = vadd.f32 %v373, %v497
    %v499 = vpop.f32.mrf.mxu0
    %v500 = vpop.f32.mrf.mxu0
    %v501 = vadd.f32 %v373, %v500
    %v502 = vpop.f32.mrf.mxu0
    %503 = vmatprep.mubr.bf16.mxu0 0
    %504 = vmatmul.mubr.bf16.gmra.mxu0 %v346
    %v505 = vpop.f32.mrf.mxu0
    %v506 = vadd.f32 %v373, %v505
    %v507 = vpop.f32.mrf.mxu0
    %v508 = vpop.f32.mrf.mxu0
    %v509 = vadd.f32 %v373, %v508
    %v510 = vpop.f32.mrf.mxu0
    %511 = vmatprep.mubr.bf16.mxu0 0
    %512 = vmatmul.mubr.bf16.gmra.mxu0 %v347
    %v513 = vpop.f32.mrf.mxu0
    %v514 = vadd.f32 %v373, %v513
    %v515 = vpop.f32.mrf.mxu0
    %v516 = vpop.f32.mrf.mxu0
    %v517 = vadd.f32 %v373, %v516
    %v518 = vpop.f32.mrf.mxu0
    %519 = vdwg.mxu0
    %v520 = vmax.f32 %v458, 0.0
    %v521 = vmax.f32 %v461, 0.0
    %v522 = vmax.f32 %v466, 0.0
    %v523 = vmax.f32 %v469, 0.0
    %v524 = vmax.f32 %v474, 0.0
    %v525 = vmax.f32 %v477, 0.0
    %v526 = vmax.f32 %v482, 0.0
    %v527 = vmax.f32 %v485, 0.0
    %v528 = vmax.f32 %v490, 0.0
    %v529 = vmax.f32 %v493, 0.0
    %v530 = vmax.f32 %v498, 0.0
    %v531 = vmax.f32 %v501, 0.0
    %v532 = vmax.f32 %v506, 0.0
    %v533 = vmax.f32 %v509, 0.0
    %v534 = vmax.f32 %v514, 0.0
    %v535 = vmax.f32 %v517, 0.0
    %v536 = vpack.c.bf16 %v521, %v520
    %v537 = vpack.c.bf16 %v523, %v522
    %v538 = vpack.c.bf16 %v525, %v524
    %v539 = vpack.c.bf16 %v527, %v526
    %v540 = vpack.c.bf16 %v529, %v528
    %v541 = vpack.c.bf16 %v531, %v530
    %v542 = vpack.c.bf16 %v533, %v532
    %v543 = vpack.c.bf16 %v535, %v534
    %v552 = vunpack.c.l.b16 %v536
    %v553 = vunpack.c.h.b16 %v536
    %v554 = vunpack.c.l.b16 %v537
    %v555 = vunpack.c.h.b16 %v537
    %v556 = vunpack.c.l.b16 %v538
    %v557 = vunpack.c.h.b16 %v538
    %v558 = vunpack.c.l.b16 %v539
    %v559 = vunpack.c.h.b16 %v539
    %v560 = vunpack.c.l.b16 %v540
    %v561 = vunpack.c.h.b16 %v540
    %v562 = vunpack.c.l.b16 %v541
    %v563 = vunpack.c.h.b16 %v541
    %v564 = vunpack.c.l.b16 %v542
    %v565 = vunpack.c.h.b16 %v542
    %v566 = vunpack.c.l.b16 %v543
    %v567 = vunpack.c.h.b16 %v543
    %v568 = vpack.c.b16 %v552, %v552
    %v569 = vpack.c.b16 %v553, %v553
    %v570 = vpack.c.b16 %v554, %v554
    %v571 = vpack.c.b16 %v555, %v555
    %v572 = vpack.c.b16 %v556, %v556
    %v573 = vpack.c.b16 %v557, %v557
    %v574 = vpack.c.b16 %v558, %v558
    %v575 = vpack.c.b16 %v559, %v559
    %v576 = vpack.c.b16 %v560, %v560
    %v577 = vpack.c.b16 %v561, %v561
    %v578 = vpack.c.b16 %v562, %v562
    %v579 = vpack.c.b16 %v563, %v563
    %v580 = vpack.c.b16 %v564, %v564
    %v581 = vpack.c.b16 %v565, %v565
    %v582 = vpack.c.b16 %v566, %v566
    %v583 = vpack.c.b16 %v567, %v567
    %600 = vst [vmem:[#allocation3] sm:$0xf] %v568
    %601 = vst [vmem:[#allocation3 + $0x4] sm:$0xf] %v569
    %602 = vst [vmem:[#allocation3 + $0x8] sm:$0xf] %v570
    %603 = vst [vmem:[#allocation3 + $0xc] sm:$0xf] %v571
    %604 = vst [vmem:[#allocation3 + $0x10] sm:$0xf] %v572
    %605 = vst [vmem:[#allocation3 + $0x14] sm:$0xf] %v573
    %606 = vst [vmem:[#allocation3 + $0x18] sm:$0xf] %v574
    %607 = vst [vmem:[#allocation3 + $0x1c] sm:$0xf] %v575
    %608 = vst [vmem:[#allocation3 + $0x20] sm:$0xf] %v576
    %609 = vst [vmem:[#allocation3 + $0x24] sm:$0xf] %v577
    %610 = vst [vmem:[#allocation3 + $0x28] sm:$0xf] %v578
    %611 = vst [vmem:[#allocation3 + $0x2c] sm:$0xf] %v579
    %612 = vst [vmem:[#allocation3 + $0x30] sm:$0xf] %v580
    %613 = vst [vmem:[#allocation3 + $0x34] sm:$0xf] %v581
    %614 = vst [vmem:[#allocation3 + $0x38] sm:$0xf] %v582
    %615 = vst [vmem:[#allocation3 + $0x3c] sm:$0xf] %v583
  $region53: #{graph_autoencoder_forward.1} parent=0 // loop_footer
    %s114 = sadd.s32 1, %s110
  $region54: #{graph_autoencoder_forward.1} parent=0 // loop_footer_branch
    %109 = sbr.rel target = $region50
  $region55: #{graph_autoencoder_forward.1} parent=0 // loop_exit
    _
  %v616 = vld [vmem:[#allocation2] sm:$0xf]
  %v617 = vld [vmem:[#allocation2 + $0x4] sm:$0xf]
  %v618 = vld [vmem:[#allocation2 + $0x8] sm:$0xf]
  %v619 = vld [vmem:[#allocation2 + $0xc] sm:$0xf]
  %v620 = vld [vmem:[#allocation2 + $0x10] sm:$0xf]
  %v621 = vld [vmem:[#allocation2 + $0x14] sm:$0xf]
  %v622 = vld [vmem:[#allocation2 + $0x18] sm:$0xf]
  %v623 = vld [vmem:[#allocation2 + $0x1c] sm:$0xf]
  %v624 = vld [vmem:[#allocation2 + $0x20] sm:$0xf]
  %v625 = vld [vmem:[#allocation2 + $0x24] sm:$0xf]
  %v626 = vld [vmem:[#allocation2 + $0x28] sm:$0xf]
  %v627 = vld [vmem:[#allocation2 + $0x2c] sm:$0xf]
  %v628 = vld [vmem:[#allocation2 + $0x30] sm:$0xf]
  %v629 = vld [vmem:[#allocation2 + $0x34] sm:$0xf]
  %v630 = vld [vmem:[#allocation2 + $0x38] sm:$0xf]
  %v631 = vld [vmem:[#allocation2 + $0x3c] sm:$0xf]
  %v632 = vld [vmem:[#allocation3] sm:$0xf]
  %v633 = vld [vmem:[#allocation3 + $0x4] sm:$0xf]
  %v634 = vld [vmem:[#allocation3 + $0x8] sm:$0xf]
  %v635 = vld [vmem:[#allocation3 + $0xc] sm:$0xf]
  %v636 = vld [vmem:[#allocation3 + $0x10] sm:$0xf]
  %v637 = vld [vmem:[#allocation3 + $0x14] sm:$0xf]
  %v638 = vld [vmem:[#allocation3 + $0x18] sm:$0xf]
  %v639 = vld [vmem:[#allocation3 + $0x1c] sm:$0xf]
  %v640 = vld [vmem:[#allocation3 + $0x20] sm:$0xf]
  %v641 = vld [vmem:[#allocation3 + $0x24] sm:$0xf]
  %v642 = vld [vmem:[#allocation3 + $0x28] sm:$0xf]
  %v643 = vld [vmem:[#allocation3 + $0x2c] sm:$0xf]
  %v644 = vld [vmem:[#allocation3 + $0x30] sm:$0xf]
  %v645 = vld [vmem:[#allocation3 + $0x34] sm:$0xf]
  %v646 = vld [vmem:[#allocation3 + $0x38] sm:$0xf]
  %v647 = vld [vmem:[#allocation3 + $0x3c] sm:$0xf]
  %v664 = vunpack.c.l.b16 %v616
  %v665 = vunpack.c.l.b16 %v617
  %v666 = vunpack.c.l.b16 %v618
  %v667 = vunpack.c.l.b16 %v619
  %v668 = vunpack.c.l.b16 %v620
  %v669 = vunpack.c.l.b16 %v621
  %v670 = vunpack.c.l.b16 %v622
  %v671 = vunpack.c.l.b16 %v623
  %v672 = vunpack.c.l.b16 %v624
  %v673 = vunpack.c.l.b16 %v625
  %v674 = vunpack.c.l.b16 %v626
  %v675 = vunpack.c.l.b16 %v627
  %v676 = vunpack.c.l.b16 %v628
  %v677 = vunpack.c.l.b16 %v629
  %v678 = vunpack.c.l.b16 %v630
  %v679 = vunpack.c.l.b16 %v631
  %v680 = vpack.c.b16 %v665, %v664
  %v681 = vpack.c.b16 %v667, %v666
  %v682 = vpack.c.b16 %v669, %v668
  %v683 = vpack.c.b16 %v671, %v670
  %v684 = vpack.c.b16 %v673, %v672
  %v685 = vpack.c.b16 %v675, %v674
  %v686 = vpack.c.b16 %v677, %v676
  %v687 = vpack.c.b16 %v679, %v678
  %v712 = vunpack.c.l.b16 %v632
  %v713 = vunpack.c.l.b16 %v633
  %v714 = vunpack.c.l.b16 %v634
  %v715 = vunpack.c.l.b16 %v635
  %v716 = vunpack.c.l.b16 %v636
  %v717 = vunpack.c.l.b16 %v637
  %v718 = vunpack.c.l.b16 %v638
  %v719 = vunpack.c.l.b16 %v639
  %v720 = vunpack.c.l.b16 %v640
  %v721 = vunpack.c.l.b16 %v641
  %v722 = vunpack.c.l.b16 %v642
  %v723 = vunpack.c.l.b16 %v643
  %v724 = vunpack.c.l.b16 %v644
  %v725 = vunpack.c.l.b16 %v645
  %v726 = vunpack.c.l.b16 %v646
  %v727 = vunpack.c.l.b16 %v647
  %v728 = vpack.c.b16 %v713, %v712
  %v729 = vpack.c.b16 %v715, %v714
  %v730 = vpack.c.b16 %v717, %v716
  %v731 = vpack.c.b16 %v719, %v718
  %v732 = vpack.c.b16 %v721, %v720
  %v733 = vpack.c.b16 %v723, %v722
  %v734 = vpack.c.b16 %v725, %v724
  %v735 = vpack.c.b16 %v727, %v726
  %744 = vmatprep.subr.bf16.mxu0 0
  %745 = vmatpush1.bf16.msra.mxu0 %v735
  %746 = vmatprep.subr.bf16.mxu0 0
  %747 = vmatpush1.bf16.msra.mxu0 %v734
  %748 = vmatprep.subr.bf16.mxu0 0
  %749 = vmatpush1.bf16.msra.mxu0 %v733
  %750 = vmatprep.subr.bf16.mxu0 0
  %751 = vmatpush1.bf16.msra.mxu0 %v732
  %752 = vmatprep.subr.bf16.mxu0 0
  %753 = vmatpush1.bf16.msra.mxu0 %v731
  %754 = vmatprep.subr.bf16.mxu0 0
  %755 = vmatpush1.bf16.msra.mxu0 %v730
  %756 = vmatprep.subr.bf16.mxu0 0
  %757 = vmatpush1.bf16.msra.mxu0 %v729
  %758 = vmatprep.subr.bf16.mxu0 0
  %759 = vmatpush1.bf16.msra.mxu0 %v728
  %760 = vmatprep.subr.bf16.mxu0 0
  %761 = vmatpush2.bf16.msra.mxu0 0
  %762 = vmatprep.subr.bf16.mxu0 0
  %763 = vmatpush2.bf16.msra.mxu0 0
  %764 = vmatprep.subr.bf16.mxu0 0
  %765 = vmatpush2.bf16.msra.mxu0 0
  %766 = vmatprep.subr.bf16.mxu0 0
  %767 = vmatpush2.bf16.msra.mxu0 0
  %768 = vmatprep.subr.bf16.mxu0 0
  %769 = vmatpush2.bf16.msra.mxu0 0
  %770 = vmatprep.subr.bf16.mxu0 0
  %771 = vmatpush2.bf16.msra.mxu0 0
  %772 = vmatprep.subr.bf16.mxu0 0
  %773 = vmatpush2.bf16.msra.mxu0 0
  %774 = vmatprep.subr.bf16.mxu0 0
  %775 = vmatpush2.bf16.msra.mxu0 0
  %776 = vmatprep.mubr.bf16.mxu0 0
  %777 = vmatmul.mubr.bf16.gmra.mxu0 %v680
  %v778 = vpop.f32.mrf.mxu0
  %v779 = vadd.f32 0.0, %v778
  %v780 = vpop.f32.mrf.mxu0
  %v781 = vpop.f32.mrf.mxu0
  %v782 = vadd.f32 0.0, %v781
  %v783 = vpop.f32.mrf.mxu0
  %784 = vmatprep.mubr.bf16.mxu0 0
  %785 = vmatmul.mubr.bf16.gmra.mxu0 %v681
  %v786 = vpop.f32.mrf.mxu0
  %v787 = vadd.f32 0.0, %v786
  %v788 = vpop.f32.mrf.mxu0
  %v789 = vpop.f32.mrf.mxu0
  %v790 = vadd.f32 0.0, %v789
  %v791 = vpop.f32.mrf.mxu0
  %792 = vmatprep.mubr.bf16.mxu0 0
  %793 = vmatmul.mubr.bf16.gmra.mxu0 %v682
  %v794 = vpop.f32.mrf.mxu0
  %v795 = vadd.f32 0.0, %v794
  %v796 = vpop.f32.mrf.mxu0
  %v797 = vpop.f32.mrf.mxu0
  %v798 = vadd.f32 0.0, %v797
  %v799 = vpop.f32.mrf.mxu0
  %800 = vmatprep.mubr.bf16.mxu0 0
  %801 = vmatmul.mubr.bf16.gmra.mxu0 %v683
  %v802 = vpop.f32.mrf.mxu0
  %v803 = vadd.f32 0.0, %v802
  %v804 = vpop.f32.mrf.mxu0
  %v805 = vpop.f32.mrf.mxu0
  %v806 = vadd.f32 0.0, %v805
  %v807 = vpop.f32.mrf.mxu0
  %808 = vmatprep.mubr.bf16.mxu0 0
  %809 = vmatmul.mubr.bf16.gmra.mxu0 %v684
  %v810 = vpop.f32.mrf.mxu0
  %v811 = vadd.f32 0.0, %v810
  %v812 = vpop.f32.mrf.mxu0
  %v813 = vpop.f32.mrf.mxu0
  %v814 = vadd.f32 0.0, %v813
  %v815 = vpop.f32.mrf.mxu0
  %816 = vmatprep.mubr.bf16.mxu0 0
  %817 = vmatmul.mubr.bf16.gmra.mxu0 %v685
  %v818 = vpop.f32.mrf.mxu0
  %v819 = vadd.f32 0.0, %v818
  %v820 = vpop.f32.mrf.mxu0
  %v821 = vpop.f32.mrf.mxu0
  %v822 = vadd.f32 0.0, %v821
  %v823 = vpop.f32.mrf.mxu0
  %824 = vmatprep.mubr.bf16.mxu0 0
  %825 = vmatmul.mubr.bf16.gmra.mxu0 %v686
  %v826 = vpop.f32.mrf.mxu0
  %v827 = vadd.f32 0.0, %v826
  %v828 = vpop.f32.mrf.mxu0
  %v829 = vpop.f32.mrf.mxu0
  %v830 = vadd.f32 0.0, %v829
  %v831 = vpop.f32.mrf.mxu0
  %832 = vmatprep.mubr.bf16.mxu0 0
  %833 = vmatmul.mubr.bf16.gmra.mxu0 %v687
  %v834 = vpop.f32.mrf.mxu0
  %v835 = vadd.f32 0.0, %v834
  %v836 = vpop.f32.mrf.mxu0
  %v837 = vpop.f32.mrf.mxu0
  %v838 = vadd.f32 0.0, %v837
  %v839 = vpop.f32.mrf.mxu0
  %840 = vdwg.mxu0
  %v841 = vpack.c.bf16 %v782, %v779
  %v842 = vpack.c.bf16 %v790, %v787
  %v843 = vpack.c.bf16 %v798, %v795
  %v844 = vpack.c.bf16 %v806, %v803
  %v845 = vpack.c.bf16 %v814, %v811
  %v846 = vpack.c.bf16 %v822, %v819
  %v847 = vpack.c.bf16 %v830, %v827
  %v848 = vpack.c.bf16 %v838, %v835
  %s849 = scalar_lea.vmem %s2, 192
  %v850 = vld [vmem:[%s849] sm:$0xf]
  %v851 = vld [vmem:[%s849 + $0x4] sm:$0xf]
  %v852 = vld [vmem:[%s849 + $0x8] sm:$0xf]
  %v853 = vld [vmem:[%s849 + $0xc] sm:$0xf]
  %v854 = vld [vmem:[%s849 + $0x10] sm:$0xf]
  %v855 = vld [vmem:[%s849 + $0x14] sm:$0xf]
  %v856 = vld [vmem:[%s849 + $0x18] sm:$0xf]
  %v857 = vld [vmem:[%s849 + $0x1c] sm:$0xf]
  %v858 = vld [vmem:[%s849 + $0x20] sm:$0xf]
  %v859 = vld [vmem:[%s849 + $0x24] sm:$0xf]
  %v860 = vld [vmem:[%s849 + $0x28] sm:$0xf]
  %v861 = vld [vmem:[%s849 + $0x2c] sm:$0xf]
  %v862 = vld [vmem:[%s849 + $0x30] sm:$0xf]
  %v863 = vld [vmem:[%s849 + $0x34] sm:$0xf]
  %v864 = vld [vmem:[%s849 + $0x38] sm:$0xf]
  %v865 = vld [vmem:[%s849 + $0x3c] sm:$0xf]
  %s866 = scalar_lea.vmem %s3, 3
  %v867 = vld [vmem:[%s866] sm:$0x1]
  %v869 = vlaneseq
  %v870 = vshrl.u32 %v869, 7
  %v871 = vsub.s32 0, %v870
  %v872 = vrot.slane %v867, %v871
  %v890 = vunpack.c.l.b16 %v850
  %v891 = vunpack.c.l.b16 %v851
  %v892 = vunpack.c.l.b16 %v852
  %v893 = vunpack.c.l.b16 %v853
  %v894 = vunpack.c.l.b16 %v854
  %v895 = vunpack.c.l.b16 %v855
  %v896 = vunpack.c.l.b16 %v856
  %v897 = vunpack.c.l.b16 %v857
  %v898 = vunpack.c.l.b16 %v858
  %v899 = vunpack.c.l.b16 %v859
  %v900 = vunpack.c.l.b16 %v860
  %v901 = vunpack.c.l.b16 %v861
  %v902 = vunpack.c.l.b16 %v862
  %v903 = vunpack.c.l.b16 %v863
  %v904 = vunpack.c.l.b16 %v864
  %v905 = vunpack.c.l.b16 %v865
  %v906 = vpack.c.b16 %v891, %v890
  %v907 = vpack.c.b16 %v893, %v892
  %v908 = vpack.c.b16 %v895, %v894
  %v909 = vpack.c.b16 %v897, %v896
  %v910 = vpack.c.b16 %v899, %v898
  %v911 = vpack.c.b16 %v901, %v900
  %v912 = vpack.c.b16 %v903, %v902
  %v913 = vpack.c.b16 %v905, %v904
  %922 = vmatprep.subr.bf16.mxu0 0
  %923 = vmatpush1.bf16.msra.mxu0 %v913
  %924 = vmatprep.subr.bf16.mxu0 0
  %925 = vmatpush1.bf16.msra.mxu0 %v912
  %926 = vmatprep.subr.bf16.mxu0 0
  %927 = vmatpush1.bf16.msra.mxu0 %v911
  %928 = vmatprep.subr.bf16.mxu0 0
  %929 = vmatpush1.bf16.msra.mxu0 %v910
  %930 = vmatprep.subr.bf16.mxu0 0
  %931 = vmatpush1.bf16.msra.mxu0 %v909
  %932 = vmatprep.subr.bf16.mxu0 0
  %933 = vmatpush1.bf16.msra.mxu0 %v908
  %934 = vmatprep.subr.bf16.mxu0 0
  %935 = vmatpush1.bf16.msra.mxu0 %v907
  %936 = vmatprep.subr.bf16.mxu0 0
  %937 = vmatpush1.bf16.msra.mxu0 %v906
  %938 = vmatprep.subr.bf16.mxu0 0
  %939 = vmatpush2.bf16.msra.mxu0 0
  %940 = vmatprep.subr.bf16.mxu0 0
  %941 = vmatpush2.bf16.msra.mxu0 0
  %942 = vmatprep.subr.bf16.mxu0 0
  %943 = vmatpush2.bf16.msra.mxu0 0
  %944 = vmatprep.subr.bf16.mxu0 0
  %945 = vmatpush2.bf16.msra.mxu0 0
  %946 = vmatprep.subr.bf16.mxu0 0
  %947 = vmatpush2.bf16.msra.mxu0 0
  %948 = vmatprep.subr.bf16.mxu0 0
  %949 = vmatpush2.bf16.msra.mxu0 0
  %950 = vmatprep.subr.bf16.mxu0 0
  %951 = vmatpush2.bf16.msra.mxu0 0
  %952 = vmatprep.subr.bf16.mxu0 0
  %953 = vmatpush2.bf16.msra.mxu0 0
  %954 = vmatprep.mubr.bf16.mxu0 0
  %955 = vmatmul.mubr.bf16.gmra.mxu0 %v841
  %v956 = vpop.f32.mrf.mxu0
  %v957 = vadd.f32 %v872, %v956
  %v958 = vpop.f32.mrf.mxu0
  %v959 = vpop.f32.mrf.mxu0
  %v960 = vadd.f32 %v872, %v959
  %v961 = vpop.f32.mrf.mxu0
  %962 = vmatprep.mubr.bf16.mxu0 0
  %963 = vmatmul.mubr.bf16.gmra.mxu0 %v842
  %v964 = vpop.f32.mrf.mxu0
  %v965 = vadd.f32 %v872, %v964
  %v966 = vpop.f32.mrf.mxu0
  %v967 = vpop.f32.mrf.mxu0
  %v968 = vadd.f32 %v872, %v967
  %v969 = vpop.f32.mrf.mxu0
  %970 = vmatprep.mubr.bf16.mxu0 0
  %971 = vmatmul.mubr.bf16.gmra.mxu0 %v843
  %v972 = vpop.f32.mrf.mxu0
  %v973 = vadd.f32 %v872, %v972
  %v974 = vpop.f32.mrf.mxu0
  %v975 = vpop.f32.mrf.mxu0
  %v976 = vadd.f32 %v872, %v975
  %v977 = vpop.f32.mrf.mxu0
  %978 = vmatprep.mubr.bf16.mxu0 0
  %979 = vmatmul.mubr.bf16.gmra.mxu0 %v844
  %v980 = vpop.f32.mrf.mxu0
  %v981 = vadd.f32 %v872, %v980
  %v982 = vpop.f32.mrf.mxu0
  %v983 = vpop.f32.mrf.mxu0
  %v984 = vadd.f32 %v872, %v983
  %v985 = vpop.f32.mrf.mxu0
  %986 = vmatprep.mubr.bf16.mxu0 0
  %987 = vmatmul.mubr.bf16.gmra.mxu0 %v845
  %v988 = vpop.f32.mrf.mxu0
  %v989 = vadd.f32 %v872, %v988
  %v990 = vpop.f32.mrf.mxu0
  %v991 = vpop.f32.mrf.mxu0
  %v992 = vadd.f32 %v872, %v991
  %v993 = vpop.f32.mrf.mxu0
  %994 = vmatprep.mubr.bf16.mxu0 0
  %995 = vmatmul.mubr.bf16.gmra.mxu0 %v846
  %v996 = vpop.f32.mrf.mxu0
  %v997 = vadd.f32 %v872, %v996
  %v998 = vpop.f32.mrf.mxu0
  %v999 = vpop.f32.mrf.mxu0
  %v1000 = vadd.f32 %v872, %v999
  %v1001 = vpop.f32.mrf.mxu0
  %1002 = vmatprep.mubr.bf16.mxu0 0
  %1003 = vmatmul.mubr.bf16.gmra.mxu0 %v847
  %v1004 = vpop.f32.mrf.mxu0
  %v1005 = vadd.f32 %v872, %v1004
  %v1006 = vpop.f32.mrf.mxu0
  %v1007 = vpop.f32.mrf.mxu0
  %v1008 = vadd.f32 %v872, %v1007
  %v1009 = vpop.f32.mrf.mxu0
  %1010 = vmatprep.mubr.bf16.mxu0 0
  %1011 = vmatmul.mubr.bf16.gmra.mxu0 %v848
  %v1012 = vpop.f32.mrf.mxu0
  %v1013 = vadd.f32 %v872, %v1012
  %v1014 = vpop.f32.mrf.mxu0
  %v1015 = vpop.f32.mrf.mxu0
  %v1016 = vadd.f32 %v872, %v1015
  %v1017 = vpop.f32.mrf.mxu0
  %1018 = vdwg.mxu0
  %v1019 = vmax.f32 %v957, 0.0
  %v1020 = vmax.f32 %v960, 0.0
  %v1021 = vmax.f32 %v965, 0.0
  %v1022 = vmax.f32 %v968, 0.0
  %v1023 = vmax.f32 %v973, 0.0
  %v1024 = vmax.f32 %v976, 0.0
  %v1025 = vmax.f32 %v981, 0.0
  %v1026 = vmax.f32 %v984, 0.0
  %v1027 = vmax.f32 %v989, 0.0
  %v1028 = vmax.f32 %v992, 0.0
  %v1029 = vmax.f32 %v997, 0.0
  %v1030 = vmax.f32 %v1000, 0.0
  %v1031 = vmax.f32 %v1005, 0.0
  %v1032 = vmax.f32 %v1008, 0.0
  %v1033 = vmax.f32 %v1013, 0.0
  %v1034 = vmax.f32 %v1016, 0.0
  %1035 = vst [vmem:[%s4] sm:$0xff] %v1019
  %1036 = vst [vmem:[%s4 + $0x8] sm:$0xff] %v1020
  %1037 = vst [vmem:[%s4 + $0x10] sm:$0xff] %v1021
  %1038 = vst [vmem:[%s4 + $0x18] sm:$0xff] %v1022
  %1039 = vst [vmem:[%s4 + $0x20] sm:$0xff] %v1023
  %1040 = vst [vmem:[%s4 + $0x28] sm:$0xff] %v1024
  %1041 = vst [vmem:[%s4 + $0x30] sm:$0xff] %v1025
  %1042 = vst [vmem:[%s4 + $0x38] sm:$0xff] %v1026
  %1043 = vst [vmem:[%s4 + $0x40] sm:$0xff] %v1027
  %1044 = vst [vmem:[%s4 + $0x48] sm:$0xff] %v1028
  %1045 = vst [vmem:[%s4 + $0x50] sm:$0xff] %v1029
  %1046 = vst [vmem:[%s4 + $0x58] sm:$0xff] %v1030
  %1047 = vst [vmem:[%s4 + $0x60] sm:$0xff] %v1031
  %1048 = vst [vmem:[%s4 + $0x68] sm:$0xff] %v1032
  %1049 = vst [vmem:[%s4 + $0x70] sm:$0xff] %v1033
  %1050 = vst [vmem:[%s4 + $0x78] sm:$0xff] %v1034
  // Predicated region
  $region56: #{graph_autoencoder_forward.1} parent=0 // pred_check
    _
  $region57: #{graph_autoencoder_forward.1} parent=0 // pred_check_branch
    %1052 = sbr.rel (0) target = $region59
  $region58: #{graph_autoencoder_forward.1} parent=0 // pred_region
    _
  $region59: #{graph_autoencoder_forward.1} parent=0 // pred_fallthru
    _
  // Predicated region
  $region60: #{graph_autoencoder_forward.1} parent=0 // pred_check
    _
  $region61: #{graph_autoencoder_forward.1} parent=0 // pred_check_branch
    %1054 = sbr.rel (0) target = $region63
  $region62: #{graph_autoencoder_forward.1} parent=0 // pred_region
    _
  $region63: #{graph_autoencoder_forward.1} parent=0 // pred_fallthru
    _

</llo_original>
